<compile_context>
chip_gen: v5e
topology: v5e:2x2
jax: 0.10.0
libtpu: 0.0.40
codegen_flags: <defaults>
</compile_context>

<pallas_src>
import jax
import jax.numpy as jnp
from jax.experimental import pallas as pl
from jax.experimental.pallas import tpu as pltpu  # noqa: F401  (TPU backend / params namespace)


def _broadcast_slots_kernel(q_ref, o_ref):
    # q_ref : (1, latent_c*dim_rep)  lane-dense VMEM view of the shared parameter
    # o_ref : (B, latent_c*dim_rep)  lane-dense VMEM output slab
    o_ref[...] = jnp.broadcast_to(q_ref[...], o_ref.shape)


def latent_motion_forward(query_slots, context, stimulus=None):
    """Pallas equivalent of LatentMotionModel.forward.

    query_slots: [1, latent_c, dim_rep]   (the nn.Parameter)
    context    : [B, S, dim_rep]          (only its batch size is used, since the
                                           reference forward performs no compute)
    Returns    : [B, latent_c, dim_rep]   query_slots tiled across the batch.
    """
    del stimulus  # unused in the reference module as well
    B = context.shape[0]
    _, latent_c, dim_rep = query_slots.shape
    feat = latent_c * dim_rep

    # Lane-dense 2-D view of the parameter.  At the demo sizes feat = 4*32 = 128, which
    # is a multiple of 128 lanes -> unmasked full-width vector stores in the kernel.
    q2d = query_slots.reshape(1, feat)

    itemsize = jnp.dtype(query_slots.dtype).itemsize
    param_bytes = feat * itemsize
    out_bytes = B * feat * itemsize

    out2d = pl.pallas_call(
        _broadcast_slots_kernel,
        out_shape=jax.ShapeDtypeStruct((B, feat), query_slots.dtype),
        # Single invocation (no grid): whole param + whole output live in VMEM.
        # Total footprint is B*feat*itemsize + feat*itemsize (~1.5 KiB at demo sizes),
        # far under the scoped-VMEM default on every generation (v5e/v6e/v7x).
        cost_estimate=pl.CostEstimate(
            flops=0,
            transcendentals=0,
            bytes_accessed=param_bytes + out_bytes,
        ),
    )(q2d)

    return out2d.reshape(B, latent_c, dim_rep)


if __name__ == "__main__":
    key = jax.random.PRNGKey(0)
    k_param, k_ctx = jax.random.split(key)

    latent_c = 4      # number of latent motion query slots
    dim_rep = 32      # representation dim  (latent_c*dim_rep = 128 -> lane-dense)
    B, S = 2, 8       # small batch / sequence for the context tensor

    # Deterministic "parameter" init, matching torch.randn(1, latent_c, dim_rep).
    query_slots = jax.random.normal(k_param, (1, latent_c, dim_rep), dtype=jnp.float32)
    context = jax.random.normal(k_ctx, (B, S, dim_rep), dtype=jnp.float32)

    out = latent_motion_forward(query_slots, context)
    out = jax.block_until_ready(out)

    # Sanity check against the trivially-known expected result (broadcast of the parameter).
    expected = jnp.broadcast_to(query_slots, (B, latent_c, dim_rep))
    assert out.shape == (B, latent_c, dim_rep)
    assert bool(jnp.allclose(out, expected))

    print("KERNEL_OK")
</pallas_src>

<mosaic_0001>
module attributes {stable_mosaic.version = 11 : i64} {
  func.func @_broadcast_slots_kernel(%arg0: memref<1x128xf32, #tpu.memory_space<vmem>>, %arg1: memref<2x128xf32, #tpu.memory_space<vmem>>) attributes {dimension_semantics = [], scalar_prefetch = 0 : i64, scratch_operands = 0 : i64, tpu.core_type = #tpu.core_type<tc>} {
    %c0 = arith.constant 0 : index
    %c0_0 = arith.constant 0 : index
    %0 = vector.load %arg0[%c0, %c0_0] : memref<1x128xf32, #tpu.memory_space<vmem>>, vector<1x128xf32>
    %1 = vector.shape_cast %0 : vector<1x128xf32> to vector<1x128xf32>
    %2 = vector.broadcast %1 : vector<1x128xf32> to vector<2x128xf32>
    %c0_1 = arith.constant 0 : index
    %c0_2 = arith.constant 0 : index
    %3 = vector.load %arg1[%c0_1, %c0_2] : memref<2x128xf32, #tpu.memory_space<vmem>>, vector<2x128xf32>
    tpu.vector_store %arg1[%c0_1, %c0_2], %2 {strides = array<i32>} : memref<2x128xf32, #tpu.memory_space<vmem>>, vector<2x128xf32>,
    return
  }
}

</mosaic_0001>

<llo_original>
// kernel: tpu_custom_call.1
$region0: #{tpu_custom_call.1}
  #allocation0 [shape = 'u32[]', space=smem, size = 0x4, offset = 0x4, fixed_abs, tag = 'smem constant byte address 0x4 - core index']
  #allocation1 [shape = 'u32[72,128]{1,0:T(1,128)}', space=vmem, size = 0x9000, scoped, tag = 'internal scratch']
  %s0 = inlined_call_operand.hbm [shape: f32[1,128], index: 0, kind: input, shape index: {}]
  %s1 = inlined_call_operand.hbm [shape: f32[2,128], index: 1, kind: output, shape index: {}]
  %s2 = sld [smem:[#allocation0]]
  $region18: #{tpu_custom_call.1} parent=0
    _
  %s4 = ssub.s32 1, %s2
  %s5 = scalar_select 0, %s4, %s2
  $region1: #{tpu_custom_call.1} parent=0
    #allocation2 [shape = 'u8[512]{0}', space=vmem, size = 0x400, scoped, tag = 'input window, operand 0, single buffered']
    #allocation3 [shape = 's32[1]{0}', space=sflag, size = 0x4, scoped, tag = 'scoped memory for tpu_custom_call.1']
    #allocation4 [shape = 's32[1]{0}', space=sflag, size = 0x4, scoped, tag = 'scoped memory for tpu_custom_call.1']
    #allocation5 [shape = 'u8[1024]{0}', space=vmem, size = 0x400, scoped, tag = 'output window, operand 0, single buffered']
    %6 = vsyncpa [#allocation3], 0
    %7 = vsyncpa [#allocation4], 0
    // Predicated region
    $region2: #{tpu_custom_call.1} parent=1 // pred_check
      _
    $region3: #{tpu_custom_call.1} parent=1 // pred_check_branch
      %9 = sbr.rel (0) target = $region5
    $region4: #{tpu_custom_call.1} parent=1 // pred_region
      %11 = vsyncadd [#allocation3], 0
      %s13 = sshll.u32 %s0, 4
      %s14 = int_to_ptr.hbm [resolvable:$true] %s13
      %s15 = sshll.u32 [#allocation2], 4
      %s16 = int_to_ptr.vmem [resolvable:$true] %s15
      %18 = dma.hbm_to_vmem [thread:$0]  %s14, 16, %s16, [#allocation3]
    $region5: #{tpu_custom_call.1} parent=1 // pred_fallthru
      _
    // Predicated region
    $region6: #{tpu_custom_call.1} parent=1 // pred_check
      _
    $region7: #{tpu_custom_call.1} parent=1 // pred_check_branch
      %20 = sbr.rel (0) target = $region9
    $region8: #{tpu_custom_call.1} parent=1 // pred_region
      %22 = dma.done [#allocation3], 16
    $region9: #{tpu_custom_call.1} parent=1 // pred_fallthru
      _
    %v23 = vld [vmem:[#allocation2] sm:$0x1]
    %v25 = vperm.slane %v23, 0
    %27 = vst [vmem:[#allocation5] sm:$0x3] %v25
    // Predicated region
    $region10: #{tpu_custom_call.1} parent=1 // pred_check
      _
    $region11: #{tpu_custom_call.1} parent=1 // pred_check_branch
      %29 = sbr.rel (0) target = $region13
    $region12: #{tpu_custom_call.1} parent=1 // pred_region
      %31 = vsyncadd [#allocation4], 0
      %s33 = sshll.u32 [#allocation5], 4
      %s34 = int_to_ptr.vmem [resolvable:$true] %s33
      %s35 = sshll.u32 %s1, 4
      %s36 = int_to_ptr.hbm [resolvable:$true] %s35
      %38 = dma.vmem_to_hbm [thread:$0]  %s34, 32, %s36, [#allocation4]
    $region13: #{tpu_custom_call.1} parent=1 // pred_fallthru
      _
    // Predicated region
    $region14: #{tpu_custom_call.1} parent=1 // pred_check
      _
    $region15: #{tpu_custom_call.1} parent=1 // pred_check_branch
      %40 = sbr.rel (0) target = $region17
    $region16: #{tpu_custom_call.1} parent=1 // pred_region
      %42 = dma.done [#allocation4], 32
    $region17: #{tpu_custom_call.1} parent=1 // pred_fallthru
      _
    %43 = vsyncpa [#allocation3], 1
    %44 = vsyncpa [#allocation4], 1

</llo_original>
